<compile_context>
chip_gen: v7x
topology: tpu7x:2x2x1
jax: 0.10.0
libtpu: 0.0.40
codegen_flags: <defaults>
</compile_context>

<pallas_src>
import functools

import jax
import jax.numpy as jnp
from jax import lax
from jax.experimental import pallas as pl
from jax.experimental.pallas import tpu as pltpu


def _vq_tile_kernel(x_ref, wt_ref, w_ref, hw2_ref, q_ref, idx_ref, sq_ref, *,
                    distance_dtype, k_real, use_gather, k_chunk):
    """One (TILE_N, D) row tile: argmin over the codebook + exact row fetch."""
    tn, _ = x_ref.shape
    k_pad = w_ref.shape[0]

    xv = x_ref[...]
    x32 = xv.astype(jnp.float32)                       # (TN, D)
    xd = xv.astype(distance_dtype)                     # (TN, D), matmul dtype

    chunked = (k_chunk is not None) and (k_pad > k_chunk)
    col = None

    if not chunked:
        # distance up to a per-row constant and positive scale: 0.5||e||^2 - x.e
        xw = jnp.dot(xd, wt_ref[...], preferred_element_type=jnp.float32)
        dist = hw2_ref[...] - xw                                     # (TN, K)
        dmin = jnp.min(dist, axis=1, keepdims=True)                  # (TN, 1)
        col = lax.broadcasted_iota(jnp.int32, (tn, k_pad), 1)
        # first-minimal index (torch.argmin tie behaviour)
        idx = jnp.min(jnp.where(dist == dmin, col, k_pad), axis=1)   # (TN,)
    else:
        # Running min/argmin over K chunks -> live temps bounded by (TN, kc).
        n_chunks = k_pad // k_chunk

        def body(c, carry):
            dmin, ridx = carry
            start = pl.multiple_of(c * k_chunk, k_chunk)
            xw = jnp.dot(xd, wt_ref[:, pl.ds(start, k_chunk)],
                         preferred_element_type=jnp.float32)         # (TN, kc)
            dist = hw2_ref[:, pl.ds(start, k_chunk)] - xw
            dmin_c = jnp.min(dist, axis=1, keepdims=True)
            col_c = lax.broadcasted_iota(jnp.int32, (tn, k_chunk), 1) + start
            idx_c = jnp.min(jnp.where(dist == dmin_c, col_c, k_pad),
                            axis=1, keepdims=True)
            better = dmin_c < dmin          # strict: earlier chunk wins ties
            return (jnp.where(better, dmin_c, dmin),
                    jnp.where(better, idx_c, ridx))

        dmin0 = jnp.full((tn, 1), jnp.inf, jnp.float32)
        idx0 = jnp.zeros((tn, 1), jnp.int32)
        _, idx2 = lax.fori_loop(0, n_chunks, body, (dmin0, idx0))
        idx = idx2[:, 0]

    # NaN guard: if a row's distances are all-NaN the where() never fires and
    # idx would be k_pad (out of range) -> clamp to a valid codeword.
    idx = jnp.minimum(idx, k_real - 1)

    if use_gather:
        # Exact codebook-row gather from the VMEM-resident f32 codebook;
        # avoids a second N*K*D MXU pass for large K.
        q = jnp.take(w_ref[...], idx, axis=0)                         # (TN, D)
    else:
        col_q = col if col is not None else \
            lax.broadcasted_iota(jnp.int32, (tn, k_pad), 1)
        onehot = (col_q == idx[:, None]).astype(jnp.float32)
        q = jnp.dot(onehot, w_ref[...], preferred_element_type=jnp.float32)

    q_ref[...] = q.astype(q_ref.dtype)
    # Lane-dense stores: (1, 1, TN) rather than lane-width-1 (TN, 1).
    idx_ref[...] = idx.astype(jnp.int32).reshape(1, 1, tn)
    diff = q - x32
    sq_ref[...] = jnp.sum(diff * diff, axis=1).reshape(1, 1, tn)


def _ortho_kernel(w_ref, o_ref, *, use_dd):
    """||off-diag(W W^T)||_F, computed once (N-independent)."""
    w = w_ref[...].astype(jnp.float32)                                # (K, D)
    if use_dd:
        # ||W W^T||_F^2 == ||W^T W||_F^2: use the (D, D) gram when D < K.
        gram = lax.dot_general(w, w, (((0,), (0,)), ((), ())),
                               preferred_element_type=jnp.float32)    # (D, D)
    else:
        gram = lax.dot_general(w, w, (((1,), (1,)), ((), ())),
                               preferred_element_type=jnp.float32)    # (K, K)
    diag = jnp.sum(w * w, axis=1)                 # ||e_i||^2 == diag(W W^T)
    off_sq = jnp.sum(gram * gram) - jnp.sum(diag * diag)
    o_ref[0] = jnp.sqrt(jnp.maximum(off_sq, 0.0))


def _round_up(x: int, m: int) -> int:
    return -(-x // m) * m


def _vmem_capacity_bytes() -> int:
    try:
        cap = getattr(pltpu.get_tpu_info(), "vmem_capacity_bytes", None)
        if cap:
            return int(cap)
    except Exception:
        pass
    return 64 * 1024 * 1024          # conservative: v7x per-TensorCore VMEM


def _pick_tile_n(n, d, k_eff, in_bytes, dist_bytes, use_onehot, vmem_limit,
                 fixed_bytes):
    """Largest tile whose per-row footprint fits the VMEM budget."""
    # x + q double-buffered, f32 / dist-dtype tile copies, plus live
    # (TN, k_eff) distance / iota (/ one-hot) temporaries.
    per_row = d * (4 * in_bytes + 8 + dist_bytes)
    per_row += k_eff * (12 if use_onehot else 8)
    budget = max(int(vmem_limit * 0.6) - fixed_bytes, 0)
    cap = max(budget // max(per_row, 1), 8)
    tile = 8
    for cand in (1024, 512, 256, 128, 64, 32, 16, 8):
        if cand <= cap:
            tile = cand
            break
    tile = min(tile, _round_up(n, 8))
    return max(8, (tile // 8) * 8)


def vector_quantizer_forward(inputs, embedding_weight,
                             commitment_cost: float = 0.25,
                             ortho_loss_weight: float = 0.09,
                             distance_dtype=jnp.bfloat16,
                             tile_n: int | None = None,
                             gather_min_k: int = 512,
                             k_chunk: int = 1024):
    """Returns (quantized, loss, encoding_indices, inputs).

    Forward values match the PyTorch module: quantized rows are exact codebook
    rows (straight-through forward value), loss = q_latent + cc*e_latent +
    olw*ortho with q_latent == e_latent == mean((q - x)^2) in the forward.
    """
    input_shape = inputs.shape
    K, D = embedding_weight.shape
    x = inputs.reshape(-1, D)
    N = x.shape[0]

    w32 = embedding_weight.astype(jnp.float32)

    # ---- codebook-side prep, hoisted out of the per-tile loop --------------
    chunk_codebook = K > 2 * k_chunk
    use_gather = chunk_codebook or K >= gather_min_k
    k_multiple = k_chunk if chunk_codebook else 128
    K_pad = _round_up(K, k_multiple)

    w_pad = jnp.pad(w32, ((0, K_pad - K), (0, 0)))                # (K_pad, D) f32
    wt = jnp.transpose(w_pad).astype(distance_dtype)              # (D, K_pad)
    hw2 = 0.5 * jnp.sum(w32 * w32, axis=1)
    # Padded codewords must never win the argmin.
    hw2 = jnp.pad(hw2, (0, K_pad - K), constant_values=1e30)
    hw2 = hw2.reshape(1, K_pad).astype(jnp.float32)

    # ---- tiling / VMEM budget ----------------------------------------------
    in_bytes = jnp.dtype(inputs.dtype).itemsize
    dist_bytes = jnp.dtype(distance_dtype).itemsize
    vmem_limit = min(int(_vmem_capacity_bytes() * 0.75), 100 * 1024 * 1024)
    fixed = K_pad * D * (4 + dist_bytes) + K_pad * 4              # resident codebook
    if tile_n is None:
        tile_n = _pick_tile_n(N, D, k_chunk if chunk_codebook else K_pad,
                              in_bytes, dist_bytes, not use_gather,
                              vmem_limit, fixed)
    num_tiles = -(-N // tile_n)
    n_pad = num_tiles * tile_n
    if n_pad != N:
        x = jnp.pad(x, ((0, n_pad - N), (0, 0)))      # zero rows, native dtype

    kernel = functools.partial(
        _vq_tile_kernel, distance_dtype=distance_dtype, k_real=K,
        use_gather=use_gather, k_chunk=k_chunk if chunk_codebook else None)

    def make_call(single_buffer_consts: bool):
        def const_spec(shape):
            kwargs = {}
            if single_buffer_consts and hasattr(pl, "Buffered"):
                # Constant operand: one VMEM buffer instead of two.
                kwargs["pipeline_mode"] = pl.Buffered(1)
            return pl.BlockSpec(shape, lambda i: tuple(0 for _ in shape),
                                **kwargs)

        return pl.pallas_call(
            kernel,
            out_shape=(
                jax.ShapeDtypeStruct((n_pad, D), inputs.dtype),            # quantized
                jax.ShapeDtypeStruct((num_tiles, 1, tile_n), jnp.int32),   # indices
                jax.ShapeDtypeStruct((num_tiles, 1, tile_n), jnp.float32), # row sq err
            ),
            grid_spec=pltpu.PrefetchScalarGridSpec(
                num_scalar_prefetch=0,
                grid=(num_tiles,),
                in_specs=[
                    pl.BlockSpec((tile_n, D), lambda i: (i, 0)),
                    const_spec((D, K_pad)),          # transposed, distance dtype
                    const_spec((K_pad, D)),          # f32, for exact row fetch
                    const_spec((1, K_pad)),          # 0.5 * ||e||^2
                ],
                out_specs=(
                    pl.BlockSpec((tile_n, D), lambda i: (i, 0)),
                    pl.BlockSpec((1, 1, tile_n), lambda i: (i, 0, 0)),
                    pl.BlockSpec((1, 1, tile_n), lambda i: (i, 0, 0)),
                ),
            ),
            compiler_params=pltpu.CompilerParams(
                dimension_semantics=("parallel",),
                vmem_limit_bytes=vmem_limit),
        )

    try:
        q, idx, sq = make_call(True)(x, wt, w_pad, hw2)
    except Exception:
        # pl.Buffered(1) not supported on this jax version -> default buffering.
        q, idx, sq = make_call(False)(x, wt, w_pad, hw2)

    # ---- N-independent orthogonality regularizer (runs once) ---------------
    ortho = pl.pallas_call(
        functools.partial(_ortho_kernel, use_dd=(D < K)),
        out_shape=jax.ShapeDtypeStruct((1,), jnp.float32),
        in_specs=[pl.BlockSpec(memory_space=pltpu.MemorySpace.VMEM)],
        out_specs=pl.BlockSpec(memory_space=pltpu.MemorySpace.SMEM),
        compiler_params=pltpu.CompilerParams(vmem_limit_bytes=vmem_limit),
    )(w32)[0]

    mse = jnp.sum(sq.reshape(-1)[:N]) / (N * D)
    loss = (1.0 + commitment_cost) * mse + ortho_loss_weight * ortho

    quantized = q[:N].reshape(input_shape)
    indices = idx.reshape(-1)[:N].reshape(N, 1)
    return quantized, loss, indices, inputs


if __name__ == "__main__":
    # Small shapes consistent with the module: (batch, embedding_dim) inputs.
    num_embeddings = 16
    embedding_dim = 32
    batch = 8
    commitment_cost = 0.25
    ortho_loss_weight = 0.09

    key = jax.random.PRNGKey(0)
    k_x, k_w = jax.random.split(key)
    inputs = jax.random.normal(k_x, (batch, embedding_dim), dtype=jnp.float32)
    # Deterministic init matching nn.Embedding.weight.data.uniform_(-1/K, 1/K).
    embedding_weight = jax.random.uniform(
        k_w, (num_embeddings, embedding_dim), dtype=jnp.float32,
        minval=-1.0 / num_embeddings, maxval=1.0 / num_embeddings)

    # Exact-parity path (f32 distances) vs a pure-JAX transcription of the
    # PyTorch forward.
    quantized, loss, indices, inputs_out = vector_quantizer_forward(
        inputs, embedding_weight, commitment_cost, ortho_loss_weight,
        distance_dtype=jnp.float32)
    jax.block_until_ready((quantized, loss, indices, inputs_out))

    d_full = (jnp.sum(inputs ** 2, axis=1, keepdims=True)
              + jnp.sum(embedding_weight ** 2, axis=1)[None, :]
              - 2.0 * inputs @ embedding_weight.T)
    ref_idx = jnp.argmin(d_full, axis=1)
    ref_q = embedding_weight[ref_idx]
    ref_mse = jnp.mean((ref_q - inputs) ** 2)
    gram = embedding_weight @ embedding_weight.T
    ref_ortho = jnp.linalg.norm(gram - jnp.diag(jnp.diag(gram)))
    ref_loss = (1.0 + commitment_cost) * ref_mse + ortho_loss_weight * ref_ortho

    assert quantized.shape == (batch, embedding_dim)
    assert indices.shape == (batch, 1)
    assert loss.shape == ()
    assert bool(jnp.all(indices[:, 0] == ref_idx)), "index mismatch"
    assert jnp.allclose(quantized, ref_q, atol=1e-5), "quantized mismatch"
    assert jnp.allclose(loss, ref_loss, rtol=1e-4, atol=1e-5), "loss mismatch"

    # Default path: bf16 distance matmul (bf16-native MXU on v5e/v6e/v7x).
    # Quantized rows stay exact codebook rows (f32 gather); argmin may differ
    # on near-ties, so only structural checks here.
    q_bf, loss_bf, idx_bf, _ = vector_quantizer_forward(
        inputs, embedding_weight, commitment_cost, ortho_loss_weight)
    jax.block_until_ready((q_bf, loss_bf, idx_bf))
    assert q_bf.shape == (batch, embedding_dim)
    assert bool(jnp.all((idx_bf >= 0) & (idx_bf < num_embeddings)))
    assert jnp.allclose(q_bf, embedding_weight[idx_bf[:, 0]], atol=1e-6), \
        "bf16-path quantized rows are not codebook rows"
    assert bool(jnp.isfinite(loss_bf))

    print("KERNEL_OK")
</pallas_src>

<mosaic_0001>
module attributes {stable_mosaic.version = 11 : i64} {
  func.func @_vq_tile_kernel(%arg0: i32, %arg1: memref<8x32xf32, #tpu.memory_space<vmem>>, %arg2: memref<32x128xf32, #tpu.memory_space<vmem>>, %arg3: memref<128x32xf32, #tpu.memory_space<vmem>>, %arg4: memref<1x128xf32, #tpu.memory_space<vmem>>, %arg5: memref<8x32xf32, #tpu.memory_space<vmem>>, %arg6: memref<1x1x8xi32, #tpu.memory_space<vmem>>, %arg7: memref<1x1x8xf32, #tpu.memory_space<vmem>>) attributes {dimension_semantics = [#tpu.dimension_semantics<parallel>], iteration_bounds = array<i64: 1>, scalar_prefetch = 0 : i64, scratch_operands = 0 : i64, tpu.core_type = #tpu.core_type<tc>, window_params = [{transform_indices = @transform_0, window_bounds = array<i64: 8, 32>}, {pipeline_mode = #tpu.pipeline_mode<synchronous>, transform_indices = @transform_1, window_bounds = array<i64: 32, 128>}, {pipeline_mode = #tpu.pipeline_mode<synchronous>, transform_indices = @transform_2, window_bounds = array<i64: 128, 32>}, {pipeline_mode = #tpu.pipeline_mode<synchronous>, transform_indices = @transform_3, window_bounds = array<i64: 1, 128>}, {transform_indices = @transform_4, window_bounds = array<i64: 8, 32>}, {transform_indices = @transform_5, window_bounds = array<i64: 1, 1, 8>}, {transform_indices = @transform_6, window_bounds = array<i64: 1, 1, 8>}]} {
    %c0 = arith.constant 0 : index
    %c0_0 = arith.constant 0 : index
    %0 = vector.load %arg1[%c0, %c0_0] : memref<8x32xf32, #tpu.memory_space<vmem>>, vector<8x32xf32>
    %c0_1 = arith.constant 0 : index
    %c0_2 = arith.constant 0 : index
    %1 = vector.load %arg2[%c0_1, %c0_2] : memref<32x128xf32, #tpu.memory_space<vmem>>, vector<32x128xf32>
    %cst = arith.constant dense<0.000000e+00> : vector<8x128xf32>
    %2 = tpu.matmul %0, %1, %cst {dimension_numbers = #tpu.dot_dimension_numbers<[1], [0], [0], [1], [0, 0, 1, 1], [], []>} : vector<8x32xf32>, vector<32x128xf32>, vector<8x128xf32> -> vector<8x128xf32>
    %c0_3 = arith.constant 0 : index
    %c0_4 = arith.constant 0 : index
    %3 = vector.load %arg4[%c0_3, %c0_4] : memref<1x128xf32, #tpu.memory_space<vmem>>, vector<1x128xf32>
    %4 = vector.broadcast %3 : vector<1x128xf32> to vector<8x128xf32>
    %5 = arith.subf %4, %2 : vector<8x128xf32>
    %cst_5 = arith.constant dense<0x7F800000> : vector<8xf32>
    %6 = vector.multi_reduction <minimumf>, %5, %cst_5 [1] : vector<8x128xf32> to vector<8xf32>
    %7 = vector.shape_cast %6 : vector<8xf32> to vector<8x1xf32>
    %8 = tpu.iota {dimensions = array<i32: 1>} : vector<8x128xi32>
    %9 = vector.broadcast %7 : vector<8x1xf32> to vector<8x128xf32>
    %10 = arith.cmpf oeq, %5, %9 : vector<8x128xf32>
    %c128_i32 = arith.constant 128 : i32
    %11 = vector.broadcast %c128_i32 : i32 to vector<8x128xi32>
    %12 = arith.select %10, %8, %11 : vector<8x128xi1>, vector<8x128xi32>
    %cst_6 = arith.constant dense<2147483647> : vector<8xi32>
    %13 = vector.multi_reduction <minsi>, %12, %cst_6 [1] : vector<8x128xi32> to vector<8xi32>
    %c15_i32 = arith.constant 15 : i32
    %14 = vector.broadcast %c15_i32 : i32 to vector<8xi32>
    %15 = arith.minsi %13, %14 : vector<8xi32>
    %16 = vector.shape_cast %15 : vector<8xi32> to vector<8x1xi32>
    %17 = vector.broadcast %16 : vector<8x1xi32> to vector<8x128xi32>
    %18 = arith.cmpi eq, %8, %17 : vector<8x128xi32>
    %19 = arith.extui %18 : vector<8x128xi1> to vector<8x128xi32>
    %20 = arith.sitofp %19 : vector<8x128xi32> to vector<8x128xf32>
    %c0_7 = arith.constant 0 : index
    %c0_8 = arith.constant 0 : index
    %21 = vector.load %arg3[%c0_7, %c0_8] : memref<128x32xf32, #tpu.memory_space<vmem>>, vector<128x32xf32>
    %cst_9 = arith.constant dense<0.000000e+00> : vector<8x32xf32>
    %22 = tpu.matmul %20, %21, %cst_9 {dimension_numbers = #tpu.dot_dimension_numbers<[1], [0], [0], [1], [0, 0, 1, 1], [], []>} : vector<8x128xf32>, vector<128x32xf32>, vector<8x32xf32> -> vector<8x32xf32>
    %c0_10 = arith.constant 0 : index
    %c0_11 = arith.constant 0 : index
    %23 = vector.load %arg5[%c0_10, %c0_11] : memref<8x32xf32, #tpu.memory_space<vmem>>, vector<8x32xf32>
    tpu.vector_store %arg5[%c0_10, %c0_11], %22 {strides = array<i32>} : memref<8x32xf32, #tpu.memory_space<vmem>>, vector<8x32xf32>,
    %24 = vector.shape_cast %15 : vector<8xi32> to vector<1x1x8xi32>
    %c0_12 = arith.constant 0 : index
    %c0_13 = arith.constant 0 : index
    %c0_14 = arith.constant 0 : index
    %25 = vector.load %arg6[%c0_12, %c0_13, %c0_14] : memref<1x1x8xi32, #tpu.memory_space<vmem>>, vector<1x1x8xi32>
    tpu.vector_store %arg6[%c0_12, %c0_13, %c0_14], %24 {strides = array<i32>} : memref<1x1x8xi32, #tpu.memory_space<vmem>>, vector<1x1x8xi32>,
    %26 = arith.subf %22, %0 : vector<8x32xf32>
    %27 = arith.mulf %26, %26 : vector<8x32xf32>
    %cst_15 = arith.constant dense<0.000000e+00> : vector<8xf32>
    %28 = vector.multi_reduction <add>, %27, %cst_15 [1] : vector<8x32xf32> to vector<8xf32>
    %29 = vector.shape_cast %28 : vector<8xf32> to vector<1x1x8xf32>
    %c0_16 = arith.constant 0 : index
    %c0_17 = arith.constant 0 : index
    %c0_18 = arith.constant 0 : index
    %30 = vector.load %arg7[%c0_16, %c0_17, %c0_18] : memref<1x1x8xf32, #tpu.memory_space<vmem>>, vector<1x1x8xf32>
    tpu.vector_store %arg7[%c0_16, %c0_17, %c0_18], %29 {strides = array<i32>} : memref<1x1x8xf32, #tpu.memory_space<vmem>>, vector<1x1x8xf32>,
    return
  }
  func.func @transform_0(%arg0: i32) -> (i32, i32) {
    %c0_i32 = arith.constant 0 : i32
    %c0_i32_0 = arith.constant 0 : i32
    return %arg0, %c0_i32 : i32, i32
  }
  func.func @transform_1(%arg0: i32) -> (i32, i32) {
    %c0_i32 = arith.constant 0 : i32
    %c0_i32_0 = arith.constant 0 : i32
    %c0_i32_1 = arith.constant 0 : i32
    return %c0_i32, %c0_i32_0 : i32, i32
  }
  func.func @transform_2(%arg0: i32) -> (i32, i32) {
    %c0_i32 = arith.constant 0 : i32
    %c0_i32_0 = arith.constant 0 : i32
    %c0_i32_1 = arith.constant 0 : i32
    return %c0_i32, %c0_i32_0 : i32, i32
  }
  func.func @transform_3(%arg0: i32) -> (i32, i32) {
    %c0_i32 = arith.constant 0 : i32
    %c0_i32_0 = arith.constant 0 : i32
    %c0_i32_1 = arith.constant 0 : i32
    return %c0_i32, %c0_i32_0 : i32, i32
  }
  func.func @transform_4(%arg0: i32) -> (i32, i32) {
    %c0_i32 = arith.constant 0 : i32
    %c0_i32_0 = arith.constant 0 : i32
    return %arg0, %c0_i32 : i32, i32
  }
  func.func @transform_5(%arg0: i32) -> (i32, i32, i32) {
    %c0_i32 = arith.constant 0 : i32
    %c0_i32_0 = arith.constant 0 : i32
    %c0_i32_1 = arith.constant 0 : i32
    return %arg0, %c0_i32, %c0_i32_0 : i32, i32, i32
  }
  func.func @transform_6(%arg0: i32) -> (i32, i32, i32) {
    %c0_i32 = arith.constant 0 : i32
    %c0_i32_0 = arith.constant 0 : i32
    %c0_i32_1 = arith.constant 0 : i32
    return %arg0, %c0_i32, %c0_i32_0 : i32, i32, i32
  }
}

module attributes {stable_mosaic.version = 11 : i64} {
  func.func @_vq_tile_kernel(%arg0: i32, %arg1: memref<8x32xf32, #tpu.memory_space<vmem>>, %arg2: memref<32x128xf32, #tpu.memory_space<vmem>>, %arg3: memref<128x32xf32, #tpu.memory_space<vmem>>, %arg4: memref<1x128xf32, #tpu.memory_space<vmem>>, %arg5: memref<8x32xf32, #tpu.memory_space<vmem>>, %arg6: memref<1x1x8xi32, #tpu.memory_space<vmem>>, %arg7: memref<1x1x8xf32, #tpu.memory_space<vmem>>) attributes {dimension_semantics = [#tpu.dimension_semantics<parallel>], iteration_bounds = array<i64: 1>, scalar_prefetch = 0 : i64, scratch_operands = 0 : i64, tpu.core_type = #tpu.core_type<tc>, window_params = [{transform_indices = @transform_0, window_bounds = array<i64: 8, 32>}, {pipeline_mode = #tpu.pipeline_mode<synchronous>, transform_indices = @transform_1, window_bounds = array<i64: 32, 128>}, {pipeline_mode = #tpu.pipeline_mode<synchronous>, transform_indices = @transform_2, window_bounds = array<i64: 128, 32>}, {pipeline_mode = #tpu.pipeline_mode<synchronous>, transform_indices = @transform_3, window_bounds = array<i64: 1, 128>}, {transform_indices = @transform_4, window_bounds = array<i64: 8, 32>}, {transform_indices = @transform_5, window_bounds = array<i64: 1, 1, 8>}, {transform_indices = @transform_6, window_bounds = array<i64: 1, 1, 8>}]} {
    %c0 = arith.constant 0 : index
    %c0_0 = arith.constant 0 : index
    %0 = vector.load %arg1[%c0, %c0_0] : memref<8x32xf32, #tpu.memory_space<vmem>>, vector<8x32xf32>
    %c0_1 = arith.constant 0 : index
    %c0_2 = arith.constant 0 : index
    %1 = vector.load %arg2[%c0_1, %c0_2] : memref<32x128xf32, #tpu.memory_space<vmem>>, vector<32x128xf32>
    %cst = arith.constant dense<0.000000e+00> : vector<8x128xf32>
    %2 = tpu.matmul %0, %1, %cst {dimension_numbers = #tpu.dot_dimension_numbers<[1], [0], [0], [1], [0, 0, 1, 1], [], []>} : vector<8x32xf32>, vector<32x128xf32>, vector<8x128xf32> -> vector<8x128xf32>
    %c0_3 = arith.constant 0 : index
    %c0_4 = arith.constant 0 : index
    %3 = vector.load %arg4[%c0_3, %c0_4] : memref<1x128xf32, #tpu.memory_space<vmem>>, vector<1x128xf32>
    %4 = vector.broadcast %3 : vector<1x128xf32> to vector<8x128xf32>
    %5 = arith.subf %4, %2 : vector<8x128xf32>
    %cst_5 = arith.constant dense<0x7F800000> : vector<8xf32>
    %6 = vector.multi_reduction <minimumf>, %5, %cst_5 [1] : vector<8x128xf32> to vector<8xf32>
    %7 = vector.shape_cast %6 : vector<8xf32> to vector<8x1xf32>
    %8 = tpu.iota {dimensions = array<i32: 1>} : vector<8x128xi32>
    %9 = vector.broadcast %7 : vector<8x1xf32> to vector<8x128xf32>
    %10 = arith.cmpf oeq, %5, %9 : vector<8x128xf32>
    %c128_i32 = arith.constant 128 : i32
    %11 = vector.broadcast %c128_i32 : i32 to vector<8x128xi32>
    %12 = arith.select %10, %8, %11 : vector<8x128xi1>, vector<8x128xi32>
    %cst_6 = arith.constant dense<2147483647> : vector<8xi32>
    %13 = vector.multi_reduction <minsi>, %12, %cst_6 [1] : vector<8x128xi32> to vector<8xi32>
    %c15_i32 = arith.constant 15 : i32
    %14 = vector.broadcast %c15_i32 : i32 to vector<8xi32>
    %15 = arith.minsi %13, %14 : vector<8xi32>
    %16 = vector.shape_cast %15 : vector<8xi32> to vector<8x1xi32>
    %17 = vector.broadcast %16 : vector<8x1xi32> to vector<8x128xi32>
    %18 = arith.cmpi eq, %8, %17 : vector<8x128xi32>
    %19 = arith.extui %18 : vector<8x128xi1> to vector<8x128xi32>
    %20 = arith.sitofp %19 : vector<8x128xi32> to vector<8x128xf32>
    %c0_7 = arith.constant 0 : index
    %c0_8 = arith.constant 0 : index
    %21 = vector.load %arg3[%c0_7, %c0_8] : memref<128x32xf32, #tpu.memory_space<vmem>>, vector<128x32xf32>
    %cst_9 = arith.constant dense<0.000000e+00> : vector<8x32xf32>
    %22 = tpu.matmul %20, %21, %cst_9 {dimension_numbers = #tpu.dot_dimension_numbers<[1], [0], [0], [1], [0, 0, 1, 1], [], []>} : vector<8x128xf32>, vector<128x32xf32>, vector<8x32xf32> -> vector<8x32xf32>
    %c0_10 = arith.constant 0 : index
    %c0_11 = arith.constant 0 : index
    %23 = vector.load %arg5[%c0_10, %c0_11] : memref<8x32xf32, #tpu.memory_space<vmem>>, vector<8x32xf32>
    tpu.vector_store %arg5[%c0_10, %c0_11], %22 {strides = array<i32>} : memref<8x32xf32, #tpu.memory_space<vmem>>, vector<8x32xf32>,
    %24 = vector.shape_cast %15 : vector<8xi32> to vector<1x1x8xi32>
    %c0_12 = arith.constant 0 : index
    %c0_13 = arith.constant 0 : index
    %c0_14 = arith.constant 0 : index
    %25 = vector.load %arg6[%c0_12, %c0_13, %c0_14] : memref<1x1x8xi32, #tpu.memory_space<vmem>>, vector<1x1x8xi32>
    tpu.vector_store %arg6[%c0_12, %c0_13, %c0_14], %24 {strides = array<i32>} : memref<1x1x8xi32, #tpu.memory_space<vmem>>, vector<1x1x8xi32>,
    %26 = arith.subf %22, %0 : vector<8x32xf32>
    %27 = arith.mulf %26, %26 : vector<8x32xf32>
    %cst_15 = arith.constant dense<0.000000e+00> : vector<8xf32>
    %28 = vector.multi_reduction <add>, %27, %cst_15 [1] : vector<8x32xf32> to vector<8xf32>
    %29 = vector.shape_cast %28 : vector<8xf32> to vector<1x1x8xf32>
    %c0_16 = arith.constant 0 : index
    %c0_17 = arith.constant 0 : index
    %c0_18 = arith.constant 0 : index
    %30 = vector.load %arg7[%c0_16, %c0_17, %c0_18] : memref<1x1x8xf32, #tpu.memory_space<vmem>>, vector<1x1x8xf32>
    tpu.vector_store %arg7[%c0_16, %c0_17, %c0_18], %29 {strides = array<i32>} : memref<1x1x8xf32, #tpu.memory_space<vmem>>, vector<1x1x8xf32>,
    return
  }
  func.func @transform_0(%arg0: i32) -> (i32, i32) {
    %c0_i32 = arith.constant 0 : i32
    %c0_i32_0 = arith.constant 0 : i32
    return %arg0, %c0_i32 : i32, i32
  }
  func.func @transform_1(%arg0: i32) -> (i32, i32) {
    %c0_i32 = arith.constant 0 : i32
    %c0_i32_0 = arith.constant 0 : i32
    %c0_i32_1 = arith.constant 0 : i32
    return %c0_i32, %c0_i32_0 : i32, i32
  }
  func.func @transform_2(%arg0: i32) -> (i32, i32) {
    %c0_i32 = arith.constant 0 : i32
    %c0_i32_0 = arith.constant 0 : i32
    %c0_i32_1 = arith.constant 0 : i32
    return %c0_i32, %c0_i32_0 : i32, i32
  }
  func.func @transform_3(%arg0: i32) -> (i32, i32) {
    %c0_i32 = arith.constant 0 : i32
    %c0_i32_0 = arith.constant 0 : i32
    %c0_i32_1 = arith.constant 0 : i32
    return %c0_i32, %c0_i32_0 : i32, i32
  }
  func.func @transform_4(%arg0: i32) -> (i32, i32) {
    %c0_i32 = arith.constant 0 : i32
    %c0_i32_0 = arith.constant 0 : i32
    return %arg0, %c0_i32 : i32, i32
  }
  func.func @transform_5(%arg0: i32) -> (i32, i32, i32) {
    %c0_i32 = arith.constant 0 : i32
    %c0_i32_0 = arith.constant 0 : i32
    %c0_i32_1 = arith.constant 0 : i32
    return %arg0, %c0_i32, %c0_i32_0 : i32, i32, i32
  }
  func.func @transform_6(%arg0: i32) -> (i32, i32, i32) {
    %c0_i32 = arith.constant 0 : i32
    %c0_i32_0 = arith.constant 0 : i32
    %c0_i32_1 = arith.constant 0 : i32
    return %arg0, %c0_i32, %c0_i32_0 : i32, i32, i32
  }
}

</mosaic_0001>

<llo_original>
// kernel: tpu_custom_call.1
$region0: #{tpu_custom_call.1}
  #allocation0 [shape = 'u32[]', space=smem, size = 0x4, offset = 0x4, fixed_abs, tag = 'smem constant byte address 0x4 - core index']
  #allocation1 [shape = 'u32[144,128]{1,0:T(1,128)}', space=vmem, size = 0x12000, scoped, tag = 'internal scratch']
  %s0 = inlined_call_operand.vmem [shape: f32[8,32], index: 0, kind: input, shape index: {}]
  %s1 = inlined_call_operand.vmem [shape: f32[32,128], index: 1, kind: input, shape index: {}]
  %s2 = inlined_call_operand.vmem [shape: f32[128,32], index: 2, kind: input, shape index: {}]
  %s3 = inlined_call_operand.vmem [shape: f32[1,128], index: 3, kind: input, shape index: {}]
  %s4 = inlined_call_operand.hbm [shape: f32[8,32], index: 4, kind: output, shape index: {0}]
  %s5 = inlined_call_operand.hbm [shape: s32[1,1,8], index: 5, kind: output, shape index: {1}]
  %s6 = inlined_call_operand.hbm [shape: f32[1,1,8], index: 6, kind: output, shape index: {2}]
  %7 = xla_tuple %s4, %s5, %s6
  %s8 = sld [smem:[#allocation0]]
  $region42: #{tpu_custom_call.1} parent=0
    _
  %s10 = ssub.s32 1, %s8
  %s11 = scalar_select 0, %s10, %s8
  $region1: #{tpu_custom_call.1} parent=0
    #allocation2 [shape = 'u8[4096]{0}', space=vmem, size = 0x1000, scoped, tag = 'output window, operand 0, single buffered']
    #allocation3 [shape = 's32[1]{0}', space=sflag, size = 0x4, scoped, tag = 'scoped memory for tpu_custom_call.1']
    #allocation4 [shape = 'u8[512]{0}', space=vmem, size = 0x400, scoped, tag = 'output window, operand 1, single buffered']
    #allocation5 [shape = 's32[1]{0}', space=sflag, size = 0x4, scoped, tag = 'scoped memory for tpu_custom_call.1']
    #allocation6 [shape = 'u8[512]{0}', space=vmem, size = 0x400, scoped, tag = 'output window, operand 2, single buffered']
    %12 = vsyncpa [#allocation3], 0
    %13 = vsyncpa [#allocation5], 0
    // Predicated region
    $region2: #{tpu_custom_call.1} parent=1 // pred_check
      _
    $region3: #{tpu_custom_call.1} parent=1 // pred_check_branch
      %15 = sbr.rel (0) target = $region5
    $region4: #{tpu_custom_call.1} parent=1 // pred_region
      _
    $region5: #{tpu_custom_call.1} parent=1 // pred_fallthru
      _
    // Predicated region
    $region6: #{tpu_custom_call.1} parent=1 // pred_check
      _
    $region7: #{tpu_custom_call.1} parent=1 // pred_check_branch
      %17 = sbr.rel (0) target = $region9
    $region8: #{tpu_custom_call.1} parent=1 // pred_region
      _
    $region9: #{tpu_custom_call.1} parent=1 // pred_fallthru
      _
    // Predicated region
    $region10: #{tpu_custom_call.1} parent=1 // pred_check
      _
    $region11: #{tpu_custom_call.1} parent=1 // pred_check_branch
      %19 = sbr.rel (0) target = $region13
    $region12: #{tpu_custom_call.1} parent=1 // pred_region
      _
    $region13: #{tpu_custom_call.1} parent=1 // pred_fallthru
      _
    // Predicated region
    $region14: #{tpu_custom_call.1} parent=1 // pred_check
      _
    $region15: #{tpu_custom_call.1} parent=1 // pred_check_branch
      %21 = sbr.rel (0) target = $region17
    $region16: #{tpu_custom_call.1} parent=1 // pred_region
      _
    $region17: #{tpu_custom_call.1} parent=1 // pred_fallthru
      _
    %v22 = vld [vmem:[%s0] sm:$0xff]
    %v23 = vld [vmem:[%s1] sm:$0xff]
    %v24 = vld [vmem:[%s1 + $0x8] sm:$0xff]
    %v25 = vld [vmem:[%s1 + $0x10] sm:$0xff]
    %v26 = vld [vmem:[%s1 + $0x18] sm:$0xff]
    %vm27 = vcmask 261120
    %v29 = vsel %vm27, %v22, 0
    %31 = vmatprep.subr.mxu0 0.0
    %32 = vmatpush1.msra.mxu0 %v23
    %33 = vmatprep.subr.mxu0 0.0
    %34 = vmatpush1.msra.mxu0 %v24
    %35 = vmatprep.subr.mxu0 0.0
    %36 = vmatpush1.msra.mxu0 %v25
    %37 = vmatprep.subr.mxu0 0.0
    %38 = vmatpush1.msra.mxu0 %v26
    %39 = vmatprep.subr.mxu0 0.0
    %40 = vmatpush1.msra.mxu0 0.0
    %41 = vmatprep.subr.mxu0 0.0
    %42 = vmatpush1.msra.mxu0 0.0
    %43 = vmatprep.subr.mxu0 0.0
    %44 = vmatpush1.msra.mxu0 0.0
    %45 = vmatprep.subr.mxu0 0.0
    %46 = vmatpush1.msra.mxu0 0.0
    %47 = vmatprep.subr.mxu0 0.0
    %48 = vmatpush1.msra.mxu0 0.0
    %49 = vmatprep.subr.mxu0 0.0
    %50 = vmatpush1.msra.mxu0 0.0
    %51 = vmatprep.subr.mxu0 0.0
    %52 = vmatpush1.msra.mxu0 0.0
    %53 = vmatprep.subr.mxu0 0.0
    %54 = vmatpush1.msra.mxu0 0.0
    %55 = vmatprep.subr.mxu0 0.0
    %56 = vmatpush1.msra.mxu0 0.0
    %57 = vmatprep.subr.mxu0 0.0
    %58 = vmatpush1.msra.mxu0 0.0
    %59 = vmatprep.subr.mxu0 0.0
    %60 = vmatpush1.msra.mxu0 0.0
    %61 = vmatprep.subr.mxu0 0.0
    %62 = vmatpush1.msra.mxu0 0.0
    %63 = vmatprep.subr.mxu0 0.0
    %64 = vmatpush1.msra.mxu0 0.0
    %65 = vmatprep.subr.mxu0 0.0
    %66 = vmatpush1.msra.mxu0 0.0
    %67 = vmatprep.subr.mxu0 0.0
    %68 = vmatpush1.msra.mxu0 0.0
    %69 = vmatprep.subr.mxu0 0.0
    %70 = vmatpush1.msra.mxu0 0.0
    %71 = vmatprep.subr.mxu0 0.0
    %72 = vmatpush1.msra.mxu0 0.0
    %73 = vmatprep.subr.mxu0 0.0
    %74 = vmatpush1.msra.mxu0 0.0
    %75 = vmatprep.subr.mxu0 0.0
    %76 = vmatpush1.msra.mxu0 0.0
    %77 = vmatprep.subr.mxu0 0.0
    %78 = vmatpush1.msra.mxu0 0.0
    %79 = vmatprep.subr.mxu0 0.0
    %80 = vmatpush1.msra.mxu0 0.0
    %81 = vmatprep.subr.mxu0 0.0
    %82 = vmatpush1.msra.mxu0 0.0
    %83 = vmatprep.subr.mxu0 0.0
    %84 = vmatpush1.msra.mxu0 0.0
    %85 = vmatprep.subr.mxu0 0.0
    %86 = vmatpush1.msra.mxu0 0.0
    %87 = vmatprep.subr.mxu0 0.0
    %88 = vmatpush1.msra.mxu0 0.0
    %89 = vmatprep.subr.mxu0 0.0
    %90 = vmatpush1.msra.mxu0 0.0
    %91 = vmatprep.subr.mxu0 0.0
    %92 = vmatpush1.msra.mxu0 0.0
    %93 = vmatprep.subr.mxu0 0.0
    %94 = vmatpush1.msra.mxu0 0.0
    %95 = vmatprep.mubr.f32.mxu0 0.0
    %96 = vmatmul.mubr.f32.gmra.mrb[0].mxu0 %v29
    %v97 = vpop.f32.mrb[0].mxu0
    %v98 = vadd.f32 0.0, %v97
    %v99 = vpop.f32.mrb[0].mxu0
    %100 = vdwg.mxu0
    %v101 = vld [vmem:[%s3] sm:$0x1]
    %v103 = vlaneseq
    %v104 = vshrl.u32 %v103, 7
    %v105 = vsub.s32 0, %v104
    %v106 = vrot.slane %v101, %v105
    %v108 = vsub.f32 %v106, %v98
    %109 = vmin.xlane.f32.xlu0 %v108
    %v110 = vpop.xlane.xlu0 %109
    %v111 = vlaneseq
    %v112 = vand.u32 %v111, 127
    %vm113 = vcmp.eq.f32.partialorder %v108, %v110
    %v114 = vsel %vm113, %v112, 128
    %v115 = vand.u32 %v114, 65535
    %v116 = vshra.s32 %v114, 16
    %v117 = vcvt.s32.f32 %v115
    %v118 = vcvt.s32.f32 %v116
    %119 = vmin.xlane.f32.xlu0 %v118
    %v120 = vpop.xlane.xlu0 %119
    %vm121 = vcmp.eq.f32.partialorder %v118, %v120
    %v122 = vsel %vm121, %v117, inf
    %123 = vmin.xlane.f32.xlu0 %v122
    %v124 = vpop.xlane.xlu0 %123
    %v125 = vcvt.f32.s32 %v124
    %v126 = vcvt.f32.s32 %v120
    %v127 = vshll.u32 %v126, 16
    %v128 = vadd.s32 %v127, %v125
    %vm129 = vcmp.lt.s32.totalorder %v128, 15
    %v130 = vsel %vm129, %v128, 15
    %vm131 = vcmp.eq.s32.totalorder %v112, %v130
    %v132 = vsel %vm131, 1, 0
    %v133 = vcvt.s32.f32 %v132
    %v134 = vld [vmem:[%s2] sm:$0xff]
    %v135 = vld [vmem:[%s2 + $0x8] sm:$0xff]
    %v136 = vld [vmem:[%s2 + $0x10] sm:$0xff]
    %v137 = vld [vmem:[%s2 + $0x18] sm:$0xff]
    %v138 = vld [vmem:[%s2 + $0x20] sm:$0xff]
    %v139 = vld [vmem:[%s2 + $0x28] sm:$0xff]
    %v140 = vld [vmem:[%s2 + $0x30] sm:$0xff]
    %v141 = vld [vmem:[%s2 + $0x38] sm:$0xff]
    %v142 = vld [vmem:[%s2 + $0x40] sm:$0xff]
    %v143 = vld [vmem:[%s2 + $0x48] sm:$0xff]
    %v144 = vld [vmem:[%s2 + $0x50] sm:$0xff]
    %v145 = vld [vmem:[%s2 + $0x58] sm:$0xff]
    %v146 = vld [vmem:[%s2 + $0x60] sm:$0xff]
    %v147 = vld [vmem:[%s2 + $0x68] sm:$0xff]
    %v148 = vld [vmem:[%s2 + $0x70] sm:$0xff]
    %v149 = vld [vmem:[%s2 + $0x78] sm:$0xff]
    %150 = vmatprep.subr.mxu0 0.0
    %151 = vmatpush1.msra.mxu0 %v134
    %152 = vmatprep.subr.mxu0 0.0
    %153 = vmatpush1.msra.mxu0 %v135
    %154 = vmatprep.subr.mxu0 0.0
    %155 = vmatpush1.msra.mxu0 %v136
    %156 = vmatprep.subr.mxu0 0.0
    %157 = vmatpush1.msra.mxu0 %v137
    %158 = vmatprep.subr.mxu0 0.0
    %159 = vmatpush1.msra.mxu0 %v138
    %160 = vmatprep.subr.mxu0 0.0
    %161 = vmatpush1.msra.mxu0 %v139
    %162 = vmatprep.subr.mxu0 0.0
    %163 = vmatpush1.msra.mxu0 %v140
    %164 = vmatprep.subr.mxu0 0.0
    %165 = vmatpush1.msra.mxu0 %v141
    %166 = vmatprep.subr.mxu0 0.0
    %167 = vmatpush1.msra.mxu0 %v142
    %168 = vmatprep.subr.mxu0 0.0
    %169 = vmatpush1.msra.mxu0 %v143
    %170 = vmatprep.subr.mxu0 0.0
    %171 = vmatpush1.msra.mxu0 %v144
    %172 = vmatprep.subr.mxu0 0.0
    %173 = vmatpush1.msra.mxu0 %v145
    %174 = vmatprep.subr.mxu0 0.0
    %175 = vmatpush1.msra.mxu0 %v146
    %176 = vmatprep.subr.mxu0 0.0
    %177 = vmatpush1.msra.mxu0 %v147
    %178 = vmatprep.subr.mxu0 0.0
    %179 = vmatpush1.msra.mxu0 %v148
    %180 = vmatprep.subr.mxu0 0.0
    %181 = vmatpush1.msra.mxu0 %v149
    %182 = vmatprep.subr.mxu0 0.0
    %183 = vmatpush1.msra.mxu0 0.0
    %184 = vmatprep.subr.mxu0 0.0
    %185 = vmatpush1.msra.mxu0 0.0
    %186 = vmatprep.subr.mxu0 0.0
    %187 = vmatpush1.msra.mxu0 0.0
    %188 = vmatprep.subr.mxu0 0.0
    %189 = vmatpush1.msra.mxu0 0.0
    %190 = vmatprep.subr.mxu0 0.0
    %191 = vmatpush1.msra.mxu0 0.0
    %192 = vmatprep.subr.mxu0 0.0
    %193 = vmatpush1.msra.mxu0 0.0
    %194 = vmatprep.subr.mxu0 0.0
    %195 = vmatpush1.msra.mxu0 0.0
    %196 = vmatprep.subr.mxu0 0.0
    %197 = vmatpush1.msra.mxu0 0.0
    %198 = vmatprep.subr.mxu0 0.0
    %199 = vmatpush1.msra.mxu0 0.0
    %200 = vmatprep.subr.mxu0 0.0
    %201 = vmatpush1.msra.mxu0 0.0
    %202 = vmatprep.subr.mxu0 0.0
    %203 = vmatpush1.msra.mxu0 0.0
    %204 = vmatprep.subr.mxu0 0.0
    %205 = vmatpush1.msra.mxu0 0.0
    %206 = vmatprep.subr.mxu0 0.0
    %207 = vmatpush1.msra.mxu0 0.0
    %208 = vmatprep.subr.mxu0 0.0
    %209 = vmatpush1.msra.mxu0 0.0
    %210 = vmatprep.subr.mxu0 0.0
    %211 = vmatpush1.msra.mxu0 0.0
    %212 = vmatprep.subr.mxu0 0.0
    %213 = vmatpush1.msra.mxu0 0.0
    %214 = vmatprep.mubr.f32.mxu0 0.0
    %215 = vmatmul.mubr.f32.gmra.mrb[0].mxu0 %v133
    %v216 = vpop.f32.mrb[0].mxu0
    %v217 = vadd.f32 0.0, %v216
    %v218 = vpop.f32.mrb[0].mxu0
    %219 = vdwg.mxu0
    %220 = vst.msk [vmem:[#allocation2] sm:$0xff] %vm27, %v217
    %v221 = vlaneseq
    %v222 = vshrl.u32 %v221, 7
    %v223 = vsub.s32 %v112, %v222
    %v224 = vrot.slane %v130, %v223
    %vm225 = vcmask 57344
    %226 = vst.msk [vmem:[#allocation4] sm:$0x1] %vm225, %v224
    %v227 = vsub.f32 %v217, %v22
    %v228 = vmul.f32 %v227, %v227
    %v229 = vsel %vm27, %v228, 0.0
    %230 = vadd.xlane.f32.xlu0 %v229
    %v231 = vpop.xlane.xlu0 %230
    %v233 = vlaneseq
    %v234 = vshrl.u32 %v233, 7
    %v235 = vsub.s32 %v112, %v234
    %v236 = vrot.slane %v231, %v235
    %238 = vst.msk [vmem:[#allocation6] sm:$0x1] %vm225, %v236
    // Predicated region
    $region18: #{tpu_custom_call.1} parent=1 // pred_check
      _
    $region19: #{tpu_custom_call.1} parent=1 // pred_check_branch
      %240 = sbr.rel (0) target = $region21
    $region20: #{tpu_custom_call.1} parent=1 // pred_region
      %s242 = ssub.s32 128, 128
      %243 = vsyncadd [#allocation3], %s242
      %s245 = sshll.u32 [#allocation2], 4
      %s246 = int_to_ptr.vmem [resolvable:$true] %s245
      %248 = dma.vmem_to_hbm [thread:$0]  %s246, 128, %s4, [#allocation3]
    $region21: #{tpu_custom_call.1} parent=1 // pred_fallthru
      _
    // Predicated region
    $region22: #{tpu_custom_call.1} parent=1 // pred_check
      _
    $region23: #{tpu_custom_call.1} parent=1 // pred_check_branch
      %250 = sbr.rel (0) target = $region25
    $region24: #{tpu_custom_call.1} parent=1 // pred_region
      %s252 = ssub.s32 16, 16
      %253 = vsyncadd [#allocation5], %s252
      %s255 = sshll.u32 [#allocation4], 4
      %s256 = int_to_ptr.vmem [resolvable:$true] %s255
      %258 = dma.vmem_to_hbm [thread:$0]  %s256, 16, %s5, [#allocation5]
    $region25: #{tpu_custom_call.1} parent=1 // pred_fallthru
      _
    // Predicated region
    $region26: #{tpu_custom_call.1} parent=1 // pred_check
      _
    $region27: #{tpu_custom_call.1} parent=1 // pred_check_branch
      %260 = sbr.rel (0) target = $region29
    $region28: #{tpu_custom_call.1} parent=1 // pred_region
      %s262 = ssub.s32 16, 16
      %263 = vsyncadd [#allocation5], %s262
      %s265 = sshll.u32 [#allocation6], 4
      %s266 = int_to_ptr.vmem [resolvable:$true] %s265
      %268 = dma.vmem_to_hbm [thread:$0]  %s266, 16, %s6, [#allocation5]
    $region29: #{tpu_custom_call.1} parent=1 // pred_fallthru
      _
    // Predicated region
    $region30: #{tpu_custom_call.1} parent=1 // pred_check
      _
    $region31: #{tpu_custom_call.1} parent=1 // pred_check_branch
      %270 = sbr.rel (0) target = $region33
    $region32: #{tpu_custom_call.1} parent=1 // pred_region
      %271 = dma.done [#allocation3], 128
    $region33: #{tpu_custom_call.1} parent=1 // pred_fallthru
      _
    // Predicated region
    $region34: #{tpu_custom_call.1} parent=1 // pred_check
      _
    $region35: #{tpu_custom_call.1} parent=1 // pred_check_branch
      %273 = sbr.rel (0) target = $region37
    $region36: #{tpu_custom_call.1} parent=1 // pred_region
      %274 = dma.done [#allocation5], 16
    $region37: #{tpu_custom_call.1} parent=1 // pred_fallthru
      _
    // Predicated region
    $region38: #{tpu_custom_call.1} parent=1 // pred_check
      _
    $region39: #{tpu_custom_call.1} parent=1 // pred_check_branch
      %276 = sbr.rel (0) target = $region41
    $region40: #{tpu_custom_call.1} parent=1 // pred_region
      %277 = dma.done [#allocation5], 16
    $region41: #{tpu_custom_call.1} parent=1 // pred_fallthru
      _
    %278 = vsyncpa [#allocation3], 1
    %279 = vsyncpa [#allocation5], 1

// kernel: tpu_custom_call.1
$region0: #{tpu_custom_call.1}
  #allocation0 [shape = 'u32[]', space=smem, size = 0x4, offset = 0x4, fixed_abs, tag = 'smem constant byte address 0x4 - core index']
  #allocation1 [shape = 'u32[144,128]{1,0:T(1,128)}', space=vmem, size = 0x12000, scoped, tag = 'internal scratch']
  %s0 = inlined_call_operand.vmem [shape: f32[8,32], index: 0, kind: input, shape index: {}]
  %s1 = inlined_call_operand.vmem [shape: f32[32,128], index: 1, kind: input, shape index: {}]
  %s2 = inlined_call_operand.vmem [shape: f32[128,32], index: 2, kind: input, shape index: {}]
  %s3 = inlined_call_operand.vmem [shape: f32[1,128], index: 3, kind: input, shape index: {}]
  %s4 = inlined_call_operand.hbm [shape: f32[8,32], index: 4, kind: output, shape index: {0}]
  %s5 = inlined_call_operand.hbm [shape: s32[1,1,8], index: 5, kind: output, shape index: {1}]
  %s6 = inlined_call_operand.hbm [shape: f32[1,1,8], index: 6, kind: output, shape index: {2}]
  %7 = xla_tuple %s4, %s5, %s6
  %s8 = sld [smem:[#allocation0]]
  $region42: #{tpu_custom_call.1} parent=0
    _
  %s10 = ssub.s32 1, %s8
  %s11 = scalar_select 0, %s10, %s8
  $region1: #{tpu_custom_call.1} parent=0
    #allocation2 [shape = 'u8[4096]{0}', space=vmem, size = 0x1000, scoped, tag = 'output window, operand 0, single buffered']
    #allocation3 [shape = 's32[1]{0}', space=sflag, size = 0x4, scoped, tag = 'scoped memory for tpu_custom_call.1']
    #allocation4 [shape = 'u8[512]{0}', space=vmem, size = 0x400, scoped, tag = 'output window, operand 1, single buffered']
    #allocation5 [shape = 's32[1]{0}', space=sflag, size = 0x4, scoped, tag = 'scoped memory for tpu_custom_call.1']
    #allocation6 [shape = 'u8[512]{0}', space=vmem, size = 0x400, scoped, tag = 'output window, operand 2, single buffered']
    %12 = vsyncpa [#allocation3], 0
    %13 = vsyncpa [#allocation5], 0
    // Predicated region
    $region2: #{tpu_custom_call.1} parent=1 // pred_check
      _
    $region3: #{tpu_custom_call.1} parent=1 // pred_check_branch
      %15 = sbr.rel (0) target = $region5
    $region4: #{tpu_custom_call.1} parent=1 // pred_region
      _
    $region5: #{tpu_custom_call.1} parent=1 // pred_fallthru
      _
    // Predicated region
    $region6: #{tpu_custom_call.1} parent=1 // pred_check
      _
    $region7: #{tpu_custom_call.1} parent=1 // pred_check_branch
      %17 = sbr.rel (0) target = $region9
    $region8: #{tpu_custom_call.1} parent=1 // pred_region
      _
    $region9: #{tpu_custom_call.1} parent=1 // pred_fallthru
      _
    // Predicated region
    $region10: #{tpu_custom_call.1} parent=1 // pred_check
      _
    $region11: #{tpu_custom_call.1} parent=1 // pred_check_branch
      %19 = sbr.rel (0) target = $region13
    $region12: #{tpu_custom_call.1} parent=1 // pred_region
      _
    $region13: #{tpu_custom_call.1} parent=1 // pred_fallthru
      _
    // Predicated region
    $region14: #{tpu_custom_call.1} parent=1 // pred_check
      _
    $region15: #{tpu_custom_call.1} parent=1 // pred_check_branch
      %21 = sbr.rel (0) target = $region17
    $region16: #{tpu_custom_call.1} parent=1 // pred_region
      _
    $region17: #{tpu_custom_call.1} parent=1 // pred_fallthru
      _
    %v22 = vld [vmem:[%s0] sm:$0xff]
    %v23 = vld [vmem:[%s1] sm:$0xff]
    %v24 = vld [vmem:[%s1 + $0x8] sm:$0xff]
    %v25 = vld [vmem:[%s1 + $0x10] sm:$0xff]
    %v26 = vld [vmem:[%s1 + $0x18] sm:$0xff]
    %vm27 = vcmask 261120
    %v29 = vsel %vm27, %v22, 0
    %31 = vmatprep.subr.mxu0 0.0
    %32 = vmatpush1.msra.mxu0 %v23
    %33 = vmatprep.subr.mxu0 0.0
    %34 = vmatpush1.msra.mxu0 %v24
    %35 = vmatprep.subr.mxu0 0.0
    %36 = vmatpush1.msra.mxu0 %v25
    %37 = vmatprep.subr.mxu0 0.0
    %38 = vmatpush1.msra.mxu0 %v26
    %39 = vmatprep.subr.mxu0 0.0
    %40 = vmatpush1.msra.mxu0 0.0
    %41 = vmatprep.subr.mxu0 0.0
    %42 = vmatpush1.msra.mxu0 0.0
    %43 = vmatprep.subr.mxu0 0.0
    %44 = vmatpush1.msra.mxu0 0.0
    %45 = vmatprep.subr.mxu0 0.0
    %46 = vmatpush1.msra.mxu0 0.0
    %47 = vmatprep.subr.mxu0 0.0
    %48 = vmatpush1.msra.mxu0 0.0
    %49 = vmatprep.subr.mxu0 0.0
    %50 = vmatpush1.msra.mxu0 0.0
    %51 = vmatprep.subr.mxu0 0.0
    %52 = vmatpush1.msra.mxu0 0.0
    %53 = vmatprep.subr.mxu0 0.0
    %54 = vmatpush1.msra.mxu0 0.0
    %55 = vmatprep.subr.mxu0 0.0
    %56 = vmatpush1.msra.mxu0 0.0
    %57 = vmatprep.subr.mxu0 0.0
    %58 = vmatpush1.msra.mxu0 0.0
    %59 = vmatprep.subr.mxu0 0.0
    %60 = vmatpush1.msra.mxu0 0.0
    %61 = vmatprep.subr.mxu0 0.0
    %62 = vmatpush1.msra.mxu0 0.0
    %63 = vmatprep.subr.mxu0 0.0
    %64 = vmatpush1.msra.mxu0 0.0
    %65 = vmatprep.subr.mxu0 0.0
    %66 = vmatpush1.msra.mxu0 0.0
    %67 = vmatprep.subr.mxu0 0.0
    %68 = vmatpush1.msra.mxu0 0.0
    %69 = vmatprep.subr.mxu0 0.0
    %70 = vmatpush1.msra.mxu0 0.0
    %71 = vmatprep.subr.mxu0 0.0
    %72 = vmatpush1.msra.mxu0 0.0
    %73 = vmatprep.subr.mxu0 0.0
    %74 = vmatpush1.msra.mxu0 0.0
    %75 = vmatprep.subr.mxu0 0.0
    %76 = vmatpush1.msra.mxu0 0.0
    %77 = vmatprep.subr.mxu0 0.0
    %78 = vmatpush1.msra.mxu0 0.0
    %79 = vmatprep.subr.mxu0 0.0
    %80 = vmatpush1.msra.mxu0 0.0
    %81 = vmatprep.subr.mxu0 0.0
    %82 = vmatpush1.msra.mxu0 0.0
    %83 = vmatprep.subr.mxu0 0.0
    %84 = vmatpush1.msra.mxu0 0.0
    %85 = vmatprep.subr.mxu0 0.0
    %86 = vmatpush1.msra.mxu0 0.0
    %87 = vmatprep.subr.mxu0 0.0
    %88 = vmatpush1.msra.mxu0 0.0
    %89 = vmatprep.subr.mxu0 0.0
    %90 = vmatpush1.msra.mxu0 0.0
    %91 = vmatprep.subr.mxu0 0.0
    %92 = vmatpush1.msra.mxu0 0.0
    %93 = vmatprep.subr.mxu0 0.0
    %94 = vmatpush1.msra.mxu0 0.0
    %95 = vmatprep.mubr.f32.mxu0 0.0
    %96 = vmatmul.mubr.f32.gmra.mrb[0].mxu0 %v29
    %v97 = vpop.f32.mrb[0].mxu0
    %v98 = vadd.f32 0.0, %v97
    %v99 = vpop.f32.mrb[0].mxu0
    %100 = vdwg.mxu0
    %v101 = vld [vmem:[%s3] sm:$0x1]
    %v103 = vlaneseq
    %v104 = vshrl.u32 %v103, 7
    %v105 = vsub.s32 0, %v104
    %v106 = vrot.slane %v101, %v105
    %v108 = vsub.f32 %v106, %v98
    %109 = vmin.xlane.f32.xlu0 %v108
    %v110 = vpop.xlane.xlu0 %109
    %v111 = vlaneseq
    %v112 = vand.u32 %v111, 127
    %vm113 = vcmp.eq.f32.partialorder %v108, %v110
    %v114 = vsel %vm113, %v112, 128
    %v115 = vand.u32 %v114, 65535
    %v116 = vshra.s32 %v114, 16
    %v117 = vcvt.s32.f32 %v115
    %v118 = vcvt.s32.f32 %v116
    %119 = vmin.xlane.f32.xlu0 %v118
    %v120 = vpop.xlane.xlu0 %119
    %vm121 = vcmp.eq.f32.partialorder %v118, %v120
    %v122 = vsel %vm121, %v117, inf
    %123 = vmin.xlane.f32.xlu0 %v122
    %v124 = vpop.xlane.xlu0 %123
    %v125 = vcvt.f32.s32 %v124
    %v126 = vcvt.f32.s32 %v120
    %v127 = vshll.u32 %v126, 16
    %v128 = vadd.s32 %v127, %v125
    %vm129 = vcmp.lt.s32.totalorder %v128, 15
    %v130 = vsel %vm129, %v128, 15
    %vm131 = vcmp.eq.s32.totalorder %v112, %v130
    %v132 = vsel %vm131, 1, 0
    %v133 = vcvt.s32.f32 %v132
    %v134 = vld [vmem:[%s2] sm:$0xff]
    %v135 = vld [vmem:[%s2 + $0x8] sm:$0xff]
    %v136 = vld [vmem:[%s2 + $0x10] sm:$0xff]
    %v137 = vld [vmem:[%s2 + $0x18] sm:$0xff]
    %v138 = vld [vmem:[%s2 + $0x20] sm:$0xff]
    %v139 = vld [vmem:[%s2 + $0x28] sm:$0xff]
    %v140 = vld [vmem:[%s2 + $0x30] sm:$0xff]
    %v141 = vld [vmem:[%s2 + $0x38] sm:$0xff]
    %v142 = vld [vmem:[%s2 + $0x40] sm:$0xff]
    %v143 = vld [vmem:[%s2 + $0x48] sm:$0xff]
    %v144 = vld [vmem:[%s2 + $0x50] sm:$0xff]
    %v145 = vld [vmem:[%s2 + $0x58] sm:$0xff]
    %v146 = vld [vmem:[%s2 + $0x60] sm:$0xff]
    %v147 = vld [vmem:[%s2 + $0x68] sm:$0xff]
    %v148 = vld [vmem:[%s2 + $0x70] sm:$0xff]
    %v149 = vld [vmem:[%s2 + $0x78] sm:$0xff]
    %150 = vmatprep.subr.mxu0 0.0
    %151 = vmatpush1.msra.mxu0 %v134
    %152 = vmatprep.subr.mxu0 0.0
    %153 = vmatpush1.msra.mxu0 %v135
    %154 = vmatprep.subr.mxu0 0.0
    %155 = vmatpush1.msra.mxu0 %v136
    %156 = vmatprep.subr.mxu0 0.0
    %157 = vmatpush1.msra.mxu0 %v137
    %158 = vmatprep.subr.mxu0 0.0
    %159 = vmatpush1.msra.mxu0 %v138
    %160 = vmatprep.subr.mxu0 0.0
    %161 = vmatpush1.msra.mxu0 %v139
    %162 = vmatprep.subr.mxu0 0.0
    %163 = vmatpush1.msra.mxu0 %v140
    %164 = vmatprep.subr.mxu0 0.0
    %165 = vmatpush1.msra.mxu0 %v141
    %166 = vmatprep.subr.mxu0 0.0
    %167 = vmatpush1.msra.mxu0 %v142
    %168 = vmatprep.subr.mxu0 0.0
    %169 = vmatpush1.msra.mxu0 %v143
    %170 = vmatprep.subr.mxu0 0.0
    %171 = vmatpush1.msra.mxu0 %v144
    %172 = vmatprep.subr.mxu0 0.0
    %173 = vmatpush1.msra.mxu0 %v145
    %174 = vmatprep.subr.mxu0 0.0
    %175 = vmatpush1.msra.mxu0 %v146
    %176 = vmatprep.subr.mxu0 0.0
    %177 = vmatpush1.msra.mxu0 %v147
    %178 = vmatprep.subr.mxu0 0.0
    %179 = vmatpush1.msra.mxu0 %v148
    %180 = vmatprep.subr.mxu0 0.0
    %181 = vmatpush1.msra.mxu0 %v149
    %182 = vmatprep.subr.mxu0 0.0
    %183 = vmatpush1.msra.mxu0 0.0
    %184 = vmatprep.subr.mxu0 0.0
    %185 = vmatpush1.msra.mxu0 0.0
    %186 = vmatprep.subr.mxu0 0.0
    %187 = vmatpush1.msra.mxu0 0.0
    %188 = vmatprep.subr.mxu0 0.0
    %189 = vmatpush1.msra.mxu0 0.0
    %190 = vmatprep.subr.mxu0 0.0
    %191 = vmatpush1.msra.mxu0 0.0
    %192 = vmatprep.subr.mxu0 0.0
    %193 = vmatpush1.msra.mxu0 0.0
    %194 = vmatprep.subr.mxu0 0.0
    %195 = vmatpush1.msra.mxu0 0.0
    %196 = vmatprep.subr.mxu0 0.0
    %197 = vmatpush1.msra.mxu0 0.0
    %198 = vmatprep.subr.mxu0 0.0
    %199 = vmatpush1.msra.mxu0 0.0
    %200 = vmatprep.subr.mxu0 0.0
    %201 = vmatpush1.msra.mxu0 0.0
    %202 = vmatprep.subr.mxu0 0.0
    %203 = vmatpush1.msra.mxu0 0.0
    %204 = vmatprep.subr.mxu0 0.0
    %205 = vmatpush1.msra.mxu0 0.0
    %206 = vmatprep.subr.mxu0 0.0
    %207 = vmatpush1.msra.mxu0 0.0
    %208 = vmatprep.subr.mxu0 0.0
    %209 = vmatpush1.msra.mxu0 0.0
    %210 = vmatprep.subr.mxu0 0.0
    %211 = vmatpush1.msra.mxu0 0.0
    %212 = vmatprep.subr.mxu0 0.0
    %213 = vmatpush1.msra.mxu0 0.0
    %214 = vmatprep.mubr.f32.mxu0 0.0
    %215 = vmatmul.mubr.f32.gmra.mrb[0].mxu0 %v133
    %v216 = vpop.f32.mrb[0].mxu0
    %v217 = vadd.f32 0.0, %v216
    %v218 = vpop.f32.mrb[0].mxu0
    %219 = vdwg.mxu0
    %220 = vst.msk [vmem:[#allocation2] sm:$0xff] %vm27, %v217
    %v221 = vlaneseq
    %v222 = vshrl.u32 %v221, 7
    %v223 = vsub.s32 %v112, %v222
    %v224 = vrot.slane %v130, %v223
    %vm225 = vcmask 57344
    %226 = vst.msk [vmem:[#allocation4] sm:$0x1] %vm225, %v224
    %v227 = vsub.f32 %v217, %v22
    %v228 = vmul.f32 %v227, %v227
    %v229 = vsel %vm27, %v228, 0.0
    %230 = vadd.xlane.f32.xlu0 %v229
    %v231 = vpop.xlane.xlu0 %230
    %v233 = vlaneseq
    %v234 = vshrl.u32 %v233, 7
    %v235 = vsub.s32 %v112, %v234
    %v236 = vrot.slane %v231, %v235
    %238 = vst.msk [vmem:[#allocation6] sm:$0x1] %vm225, %v236
    // Predicated region
    $region18: #{tpu_custom_call.1} parent=1 // pred_check
      _
    $region19: #{tpu_custom_call.1} parent=1 // pred_check_branch
      %240 = sbr.rel (0) target = $region21
    $region20: #{tpu_custom_call.1} parent=1 // pred_region
      %s242 = ssub.s32 128, 128
      %243 = vsyncadd [#allocation3], %s242
      %s245 = sshll.u32 [#allocation2], 4
      %s246 = int_to_ptr.vmem [resolvable:$true] %s245
      %248 = dma.vmem_to_hbm [thread:$0]  %s246, 128, %s4, [#allocation3]
    $region21: #{tpu_custom_call.1} parent=1 // pred_fallthru
      _
    // Predicated region
    $region22: #{tpu_custom_call.1} parent=1 // pred_check
      _
    $region23: #{tpu_custom_call.1} parent=1 // pred_check_branch
      %250 = sbr.rel (0) target = $region25
    $region24: #{tpu_custom_call.1} parent=1 // pred_region
      %s252 = ssub.s32 16, 16
      %253 = vsyncadd [#allocation5], %s252
      %s255 = sshll.u32 [#allocation4], 4
      %s256 = int_to_ptr.vmem [resolvable:$true] %s255
      %258 = dma.vmem_to_hbm [thread:$0]  %s256, 16, %s5, [#allocation5]
    $region25: #{tpu_custom_call.1} parent=1 // pred_fallthru
      _
    // Predicated region
    $region26: #{tpu_custom_call.1} parent=1 // pred_check
      _
    $region27: #{tpu_custom_call.1} parent=1 // pred_check_branch
      %260 = sbr.rel (0) target = $region29
    $region28: #{tpu_custom_call.1} parent=1 // pred_region
      %s262 = ssub.s32 16, 16
      %263 = vsyncadd [#allocation5], %s262
      %s265 = sshll.u32 [#allocation6], 4
      %s266 = int_to_ptr.vmem [resolvable:$true] %s265
      %268 = dma.vmem_to_hbm [thread:$0]  %s266, 16, %s6, [#allocation5]
    $region29: #{tpu_custom_call.1} parent=1 // pred_fallthru
      _
    // Predicated region
    $region30: #{tpu_custom_call.1} parent=1 // pred_check
      _
    $region31: #{tpu_custom_call.1} parent=1 // pred_check_branch
      %270 = sbr.rel (0) target = $region33
    $region32: #{tpu_custom_call.1} parent=1 // pred_region
      %271 = dma.done [#allocation3], 128
    $region33: #{tpu_custom_call.1} parent=1 // pred_fallthru
      _
    // Predicated region
    $region34: #{tpu_custom_call.1} parent=1 // pred_check
      _
    $region35: #{tpu_custom_call.1} parent=1 // pred_check_branch
      %273 = sbr.rel (0) target = $region37
    $region36: #{tpu_custom_call.1} parent=1 // pred_region
      %274 = dma.done [#allocation5], 16
    $region37: #{tpu_custom_call.1} parent=1 // pred_fallthru
      _
    // Predicated region
    $region38: #{tpu_custom_call.1} parent=1 // pred_check
      _
    $region39: #{tpu_custom_call.1} parent=1 // pred_check_branch
      %276 = sbr.rel (0) target = $region41
    $region40: #{tpu_custom_call.1} parent=1 // pred_region
      %277 = dma.done [#allocation5], 16
    $region41: #{tpu_custom_call.1} parent=1 // pred_fallthru
      _
    %278 = vsyncpa [#allocation3], 1
    %279 = vsyncpa [#allocation5], 1

</llo_original>
